<compile_context>
chip_gen: v5e
topology: v5e:2x2
jax: 0.10.0
libtpu: 0.0.40
codegen_flags: <defaults>
</compile_context>

<pallas_src>
import jax
import jax.numpy as jnp
from jax.experimental import pallas as pl
from jax.experimental.pallas import tpu as pltpu


def _scaled_tanh_kernel(scaler_ref, x_ref, o_ref):
    # scaler lives in SMEM; compute in f32 (native EUP path on all TPU gens),
    # HBM I/O stays in the input dtype.
    s = scaler_ref[0]
    x = x_ref[...].astype(jnp.float32)
    o_ref[...] = jnp.tanh(s * x).astype(o_ref.dtype)


_LANE_CANDIDATES = (4096, 2048, 1024, 512, 256, 128)
_TARGET_BLOCK_BYTES = 4 * 1024 * 1024  # ~4 MiB per block (2-8 MiB sweet spot)


def scaled_tanh(x, scaler=2.0):
    """Apply y = tanh(scaler * x) elementwise via a Pallas TPU kernel.

    Accepts any shape / float dtype; preserves shape and dtype.
    """
    orig_shape = x.shape
    orig_dtype = x.dtype
    n = x.size
    if n == 0:
        return x

    itemsize = jnp.dtype(orig_dtype).itemsize

    # Widest lane-dense last dim that divides n exactly (no pad copy needed);
    # otherwise fall back to a minimal pad up to a 128 multiple.
    lanes = None
    for cand in _LANE_CANDIDATES:
        if n % cand == 0:
            lanes = cand
            break
    if lanes is None:
        lanes = 128
    rows = -(-n // lanes)  # ceil div
    padded_n = rows * lanes

    x_flat = jnp.ravel(x)
    if padded_n != n:
        x_flat = jnp.pad(x_flat, (0, padded_n - n))
    x2d = x_flat.reshape(rows, lanes)

    # Block rows: target ~4 MiB blocks in the native dtype (multiple of 8).
    # If the whole array fits in one block, use the full extent (allowed).
    tile_rows = max(8, (_TARGET_BLOCK_BYTES // (lanes * itemsize)) // 8 * 8)
    if rows <= tile_rows:
        tile_rows = rows
    grid = (pl.cdiv(rows, tile_rows),)

    scaler_arr = jnp.full((1,), scaler, dtype=jnp.float32)

    y2d = pl.pallas_call(
        _scaled_tanh_kernel,
        out_shape=jax.ShapeDtypeStruct((rows, lanes), orig_dtype),
        grid_spec=pltpu.PrefetchScalarGridSpec(
            num_scalar_prefetch=0,
            grid=grid,
            in_specs=[
                # scaler: whole (1,) array resident in SMEM for every step.
                pl.BlockSpec(memory_space=pltpu.MemorySpace.SMEM),
                pl.BlockSpec((tile_rows, lanes), lambda i: (i, 0)),
            ],
            out_specs=pl.BlockSpec((tile_rows, lanes), lambda i: (i, 0)),
        ),
        compiler_params=pltpu.CompilerParams(
            dimension_semantics=("parallel",),
            vmem_limit_bytes=48 * 1024 * 1024,
        ),
    )(scaler_arr, x2d)

    if padded_n != n:
        y = y2d.reshape(-1)[:n].reshape(orig_shape)
    else:
        y = y2d.reshape(orig_shape)
    return y


if __name__ == "__main__":
    key = jax.random.PRNGKey(0)
    scaler = 2.0

    # NCHW, consistent with PyTorch conventions (elementwise op, layout-agnostic).
    x = jax.random.normal(key, (2, 4, 16, 16), dtype=jnp.float32)
    y = jax.block_until_ready(scaled_tanh(x, scaler))
    y_ref = jnp.tanh(scaler * x)
    assert y.shape == x.shape and y.dtype == x.dtype
    assert jnp.allclose(y, y_ref, atol=1e-5, rtol=1e-5)

    # bf16 path: native-dtype HBM I/O, f32 compute inside the kernel.
    xb = jax.random.normal(key, (2, 4, 16, 16), dtype=jnp.bfloat16)
    yb = jax.block_until_ready(scaled_tanh(xb, scaler))
    yb_ref = jnp.tanh(scaler * xb.astype(jnp.float32)).astype(jnp.bfloat16)
    assert yb.dtype == jnp.bfloat16
    assert jnp.allclose(
        yb.astype(jnp.float32), yb_ref.astype(jnp.float32), atol=1e-2, rtol=1e-2
    )

    # Odd size (exercises the minimal-pad fallback path).
    xo = jax.random.normal(key, (3, 5, 7), dtype=jnp.float32)
    yo = jax.block_until_ready(scaled_tanh(xo, scaler))
    assert jnp.allclose(yo, jnp.tanh(scaler * xo), atol=1e-5, rtol=1e-5)

    print("KERNEL_OK")
</pallas_src>

<mosaic_0001>
module attributes {stable_mosaic.version = 11 : i64} {
  func.func @_scaled_tanh_kernel(%arg0: i32, %arg1: memref<1xf32, #tpu.memory_space<smem>>, %arg2: memref<1x2048xf32, #tpu.memory_space<vmem>>, %arg3: memref<1x2048xf32, #tpu.memory_space<vmem>>) attributes {dimension_semantics = [#tpu.dimension_semantics<parallel>], iteration_bounds = array<i64: 1>, scalar_prefetch = 0 : i64, scratch_operands = 0 : i64, tpu.core_type = #tpu.core_type<tc>, window_params = [{transform_indices = @transform_0, window_bounds = array<i64: 1>}, {transform_indices = @transform_1, window_bounds = array<i64: 1, 2048>}, {transform_indices = @transform_2, window_bounds = array<i64: 1, 2048>}]} {
    %c0 = arith.constant 0 : index
    %0 = memref.load %arg1[%c0] : memref<1xf32, #tpu.memory_space<smem>>
    %c0_0 = arith.constant 0 : index
    %c0_1 = arith.constant 0 : index
    %1 = vector.load %arg2[%c0_0, %c0_1] : memref<1x2048xf32, #tpu.memory_space<vmem>>, vector<1x2048xf32>
    %2 = vector.broadcast %0 : f32 to vector<1x2048xf32>
    %3 = arith.mulf %2, %1 : vector<1x2048xf32>
    %4 = math.tanh %3 : vector<1x2048xf32>
    %c0_2 = arith.constant 0 : index
    %c0_3 = arith.constant 0 : index
    %5 = vector.load %arg3[%c0_2, %c0_3] : memref<1x2048xf32, #tpu.memory_space<vmem>>, vector<1x2048xf32>
    tpu.vector_store %arg3[%c0_2, %c0_3], %4 {strides = array<i32>} : memref<1x2048xf32, #tpu.memory_space<vmem>>, vector<1x2048xf32>,
    return
  }
  func.func @transform_0(%arg0: i32) -> i32 {
    %c0_i32 = arith.constant 0 : i32
    %c0_i32_0 = arith.constant 0 : i32
    return %c0_i32 : i32
  }
  func.func @transform_1(%arg0: i32) -> (i32, i32) {
    %c0_i32 = arith.constant 0 : i32
    %c0_i32_0 = arith.constant 0 : i32
    return %arg0, %c0_i32 : i32, i32
  }
  func.func @transform_2(%arg0: i32) -> (i32, i32) {
    %c0_i32 = arith.constant 0 : i32
    %c0_i32_0 = arith.constant 0 : i32
    return %arg0, %c0_i32 : i32, i32
  }
}

</mosaic_0001>

<llo_original>
// kernel: tpu_custom_call.1
$region0: #{tpu_custom_call.1}
  #allocation0 [shape = 'u32[]', space=smem, size = 0x4, offset = 0x4, fixed_abs, tag = 'smem constant byte address 0x4 - core index']
  #allocation1 [shape = 'u32[72,128]{1,0:T(1,128)}', space=vmem, size = 0x9000, scoped, tag = 'internal scratch']
  #allocation2 [shape = 'f32[1]{0:T(128)S(6)}', space=smem, size = 0x200, scoped, tag = 'scoped memory for tpu_custom_call.1']
  %s0 = inlined_call_operand.<no memory space> [shape: f32[1], index: 0, kind: input, shape index: {}]
  %s1 = inlined_call_operand.hbm [shape: f32[1,2048], index: 1, kind: input, shape index: {}]
  %s2 = inlined_call_operand.hbm [shape: f32[1,2048], index: 2, kind: output, shape index: {}]
  %s3 = sld [smem:[#allocation0]]
  $region22: #{tpu_custom_call.1} parent=0
    _
  %s5 = ssub.s32 1, %s3
  %s6 = scalar_select 0, %s5, %s3
  %7 = sst [smem:[#allocation2]] %s0
  $region1: #{tpu_custom_call.1} parent=0
    #allocation3 [shape = 'u8[8192]{0}', space=vmem, size = 0x2000, scoped, tag = 'input window, operand 1, single buffered']
    #allocation4 [shape = 's32[1]{0}', space=sflag, size = 0x4, scoped, tag = 'scoped memory for tpu_custom_call.1']
    #allocation5 [shape = 's32[1]{0}', space=sflag, size = 0x4, scoped, tag = 'scoped memory for tpu_custom_call.1']
    #allocation6 [shape = 'u8[8192]{0}', space=vmem, size = 0x2000, scoped, tag = 'output window, operand 0, single buffered']
    %8 = vsyncpa [#allocation4], 0
    %9 = vsyncpa [#allocation5], 0
    // Predicated region
    $region2: #{tpu_custom_call.1} parent=1 // pred_check
      _
    $region3: #{tpu_custom_call.1} parent=1 // pred_check_branch
      %11 = sbr.rel (0) target = $region5
    $region4: #{tpu_custom_call.1} parent=1 // pred_region
      _
    $region5: #{tpu_custom_call.1} parent=1 // pred_fallthru
      _
    // Predicated region
    $region6: #{tpu_custom_call.1} parent=1 // pred_check
      _
    $region7: #{tpu_custom_call.1} parent=1 // pred_check_branch
      %13 = sbr.rel (0) target = $region9
    $region8: #{tpu_custom_call.1} parent=1 // pred_region
      %15 = vsyncadd [#allocation4], 0
      %s17 = sshll.u32 %s1, 4
      %s18 = int_to_ptr.hbm [resolvable:$true] %s17
      %s19 = sshll.u32 [#allocation3], 4
      %s20 = int_to_ptr.vmem [resolvable:$true] %s19
      %22 = dma.hbm_to_vmem [thread:$0]  %s18, 256, %s20, [#allocation4]
    $region9: #{tpu_custom_call.1} parent=1 // pred_fallthru
      _
    // Predicated region
    $region10: #{tpu_custom_call.1} parent=1 // pred_check
      _
    $region11: #{tpu_custom_call.1} parent=1 // pred_check_branch
      %24 = sbr.rel (0) target = $region13
    $region12: #{tpu_custom_call.1} parent=1 // pred_region
      %26 = dma.done [#allocation4], 256
    $region13: #{tpu_custom_call.1} parent=1 // pred_fallthru
      _
    %s27 = sld [smem:[#allocation2]]
    %v28 = vld [vmem:[#allocation3] sm:$0xff]
    %v29 = vld [vmem:[#allocation3 + $0x8] sm:$0xff]
    %v30 = vstv %s27
    %v31 = vmul.f32 %v30, %v28
    %v32 = vmul.f32 %v30, %v29
    %v33 = vtanh.pop %v31
    %v34 = vtanh.pop %v32
    %35 = vst [vmem:[#allocation6] sm:$0xff] %v33
    %36 = vst [vmem:[#allocation6 + $0x8] sm:$0xff] %v34
    // Predicated region
    $region14: #{tpu_custom_call.1} parent=1 // pred_check
      _
    $region15: #{tpu_custom_call.1} parent=1 // pred_check_branch
      %38 = sbr.rel (0) target = $region17
    $region16: #{tpu_custom_call.1} parent=1 // pred_region
      %40 = vsyncadd [#allocation5], 0
      %s42 = sshll.u32 [#allocation6], 4
      %s43 = int_to_ptr.vmem [resolvable:$true] %s42
      %s44 = sshll.u32 %s2, 4
      %s45 = int_to_ptr.hbm [resolvable:$true] %s44
      %47 = dma.vmem_to_hbm [thread:$0]  %s43, 256, %s45, [#allocation5]
    $region17: #{tpu_custom_call.1} parent=1 // pred_fallthru
      _
    // Predicated region
    $region18: #{tpu_custom_call.1} parent=1 // pred_check
      _
    $region19: #{tpu_custom_call.1} parent=1 // pred_check_branch
      %49 = sbr.rel (0) target = $region21
    $region20: #{tpu_custom_call.1} parent=1 // pred_region
      %51 = dma.done [#allocation5], 256
    $region21: #{tpu_custom_call.1} parent=1 // pred_fallthru
      _
    %52 = vsyncpa [#allocation4], 1
    %53 = vsyncpa [#allocation5], 1

</llo_original>
